<compile_context>
chip_gen: v5e
topology: v5e:2x2
jax: 0.10.0
libtpu: 0.0.40
codegen_flags: <defaults>
</compile_context>

<pallas_src>
import jax
import jax.numpy as jnp
import numpy as np
from jax.experimental import pallas as pl
from jax.experimental.pallas import tpu as pltpu

INPUT_DIM = 66
HIDDEN1 = 128
HIDDEN2 = 64
NUM_LABELS = 8


def _round_up(n, m):
    return ((n + m - 1) // m) * m


def _cdiv(a, b):
    return (a + b - 1) // b


def mlp_kernel(x_ref, w1_ref, b1_ref, w2_ref, b2_ref, w3_ref, b3_ref, o_ref):
    # Entire 3-layer MLP fused into one kernel invocation per batch tile.
    # Weights may be bf16; x is cast in-vreg (no extra HBM pass).  MXU
    # accumulation is always f32 and the bias-add / ReLU run in f32 on the VPU.
    cdtype = w1_ref.dtype
    x = x_ref[...].astype(cdtype)
    h1 = jnp.dot(x, w1_ref[...], preferred_element_type=jnp.float32) + b1_ref[...]
    h1 = jnp.maximum(h1, 0.0).astype(cdtype)
    h2 = jnp.dot(h1, w2_ref[...], preferred_element_type=jnp.float32) + b2_ref[...]
    h2 = jnp.maximum(h2, 0.0).astype(cdtype)
    out = jnp.dot(h2, w3_ref[...], preferred_element_type=jnp.float32) + b3_ref[...]
    o_ref[...] = out.astype(o_ref.dtype)


def posture_mlp_forward(x, params, *, bm=2048, compute_dtype=jnp.float32):
    """x: (B, 66) float32. params: weights stored (in, out), biases (1, out).

    compute_dtype=jnp.bfloat16 is recommended on v6e/v7x (x is cast inside the
    kernel, f32 accumulation kept); leave f32 on v5e.
    """
    B, D = x.shape
    assert D == INPUT_DIM

    w1, b1, w2, b2, w3, b3 = (
        params["w1"], params["b1"], params["w2"],
        params["b2"], params["w3"], params["b3"],
    )

    # Tiny weights: cast in the wrapper (negligible). x stays f32 in HBM.
    w1c = w1.astype(compute_dtype)
    w2c = w2.astype(compute_dtype)
    w3c = w3.astype(compute_dtype)
    b1c = b1.astype(jnp.float32)
    b2c = b2.astype(jnp.float32)
    b3c = b3.astype(jnp.float32)

    # --- batch tiling with bounded tail padding -----------------------------
    # Pad only to a multiple of 8 plus per-tile rounding (waste <= 8*n_tiles
    # rows), never up to a whole extra tile.
    B8 = _round_up(B, 8)
    n_tiles = max(1, _cdiv(B8, bm))
    # v7x megacore: a large single-tile batch would leave one TC idle; split
    # it so the "parallel" grid axis shards across both cores.  (No effect on
    # correctness or on v5e/v6e beyond a second tiny grid step.)
    if n_tiles == 1 and B8 >= 1024:
        n_tiles = 2
    bm_eff = _round_up(_cdiv(B8, n_tiles), 8)
    B_pad = n_tiles * bm_eff
    x_in = x if B_pad == B else jnp.pad(x, ((0, B_pad - B), (0, 0)))
    grid = (n_tiles,)

    # Small weights: full blocks, constant index_map -> resident across grid.
    def full_spec(shape):
        return pl.BlockSpec(shape, lambda i: (0, 0))

    w_itemsize = jnp.dtype(compute_dtype).itemsize
    cost = pl.CostEstimate(
        flops=2 * B_pad * (INPUT_DIM * HIDDEN1 + HIDDEN1 * HIDDEN2
                           + HIDDEN2 * NUM_LABELS),
        transcendentals=0,
        bytes_accessed=(
            B_pad * INPUT_DIM * 4                      # x read (f32)
            + B_pad * NUM_LABELS * 4                   # out write (f32)
            + (INPUT_DIM * HIDDEN1 + HIDDEN1 * HIDDEN2
               + HIDDEN2 * NUM_LABELS) * w_itemsize    # weights
            + (HIDDEN1 + HIDDEN2 + NUM_LABELS) * 4     # biases (f32)
        ),
    )

    out = pl.pallas_call(
        mlp_kernel,
        out_shape=jax.ShapeDtypeStruct((B_pad, NUM_LABELS), jnp.float32),
        grid_spec=pltpu.PrefetchScalarGridSpec(
            num_scalar_prefetch=0,
            grid=grid,
            in_specs=[
                # (bm, 66): last dim == full array dim -> allowed, and Mosaic
                # pads K to 128 inside VMEM/MXU (compute is negligible here).
                pl.BlockSpec((bm_eff, INPUT_DIM), lambda i: (i, 0)),
                full_spec((INPUT_DIM, HIDDEN1)),
                full_spec((1, HIDDEN1)),
                full_spec((HIDDEN1, HIDDEN2)),
                full_spec((1, HIDDEN2)),
                full_spec((HIDDEN2, NUM_LABELS)),
                full_spec((1, NUM_LABELS)),
            ],
            # (bm, 8): last dim == full array dim -> contiguous HBM writeback.
            out_specs=pl.BlockSpec((bm_eff, NUM_LABELS), lambda i: (i, 0)),
        ),
        compiler_params=pltpu.CompilerParams(
            dimension_semantics=("parallel",),
        ),
        cost_estimate=cost,
    )(x_in, w1c, b1c, w2c, b2c, w3c, b3c)

    # Strip batch-tail padding only (output is already 8-wide).
    return out[:B] if B_pad != B else out


def init_params(key):
    """Deterministic init matching PyTorch Linear shapes (stored as (in, out))."""
    ks = jax.random.split(key, 6)

    def linear(kw, kb, fan_in, fan_out):
        bound = 1.0 / np.sqrt(fan_in)
        w = jax.random.uniform(kw, (fan_in, fan_out), jnp.float32, -bound, bound)
        b = jax.random.uniform(kb, (1, fan_out), jnp.float32, -bound, bound)
        return w, b

    w1, b1 = linear(ks[0], ks[1], INPUT_DIM, HIDDEN1)
    w2, b2 = linear(ks[2], ks[3], HIDDEN1, HIDDEN2)
    w3, b3 = linear(ks[4], ks[5], HIDDEN2, NUM_LABELS)
    return {"w1": w1, "b1": b1, "w2": w2, "b2": b2, "w3": w3, "b3": b3}


def reference_forward(x, p):
    h1 = jnp.maximum(x @ p["w1"] + p["b1"], 0.0)
    h2 = jnp.maximum(h1 @ p["w2"] + p["b2"], 0.0)
    return h2 @ p["w3"] + p["b3"]


if __name__ == "__main__":
    key = jax.random.PRNGKey(0)
    k_param, k_x = jax.random.split(key)
    params = init_params(k_param)

    # Ragged small batch (not a multiple of 8) to exercise the padded-tail path.
    B = 50
    x = jax.random.normal(k_x, (B, INPUT_DIM), jnp.float32)
    ref = reference_forward(x, params)

    # f32 compute path: must match the reference tightly.
    out_f32 = jax.block_until_ready(posture_mlp_forward(x, params))
    np.testing.assert_allclose(np.asarray(out_f32), np.asarray(ref),
                               rtol=1e-5, atol=1e-5)

    # bf16 compute path (v6e/v7x MXU-native): looser tolerance, f32 accumulation.
    out_bf16 = jax.block_until_ready(
        posture_mlp_forward(x, params, compute_dtype=jnp.bfloat16))
    np.testing.assert_allclose(np.asarray(out_bf16), np.asarray(ref),
                               rtol=2e-2, atol=2e-2)

    print("KERNEL_OK")
</pallas_src>

<mosaic_0001>
module attributes {stable_mosaic.version = 11 : i64} {
  func.func @mlp_kernel(%arg0: i32, %arg1: memref<56x66xf32, #tpu.memory_space<vmem>>, %arg2: memref<66x128xf32, #tpu.memory_space<vmem>>, %arg3: memref<1x128xf32, #tpu.memory_space<vmem>>, %arg4: memref<128x64xf32, #tpu.memory_space<vmem>>, %arg5: memref<1x64xf32, #tpu.memory_space<vmem>>, %arg6: memref<64x8xf32, #tpu.memory_space<vmem>>, %arg7: memref<1x8xf32, #tpu.memory_space<vmem>>, %arg8: memref<56x8xf32, #tpu.memory_space<vmem>>) attributes {dimension_semantics = [#tpu.dimension_semantics<parallel>], iteration_bounds = array<i64: 1>, scalar_prefetch = 0 : i64, scratch_operands = 0 : i64, tpu.core_type = #tpu.core_type<tc>, window_params = [{transform_indices = @transform_0, window_bounds = array<i64: 56, 66>}, {pipeline_mode = #tpu.pipeline_mode<synchronous>, transform_indices = @transform_1, window_bounds = array<i64: 66, 128>}, {pipeline_mode = #tpu.pipeline_mode<synchronous>, transform_indices = @transform_2, window_bounds = array<i64: 1, 128>}, {pipeline_mode = #tpu.pipeline_mode<synchronous>, transform_indices = @transform_3, window_bounds = array<i64: 128, 64>}, {pipeline_mode = #tpu.pipeline_mode<synchronous>, transform_indices = @transform_4, window_bounds = array<i64: 1, 64>}, {pipeline_mode = #tpu.pipeline_mode<synchronous>, transform_indices = @transform_5, window_bounds = array<i64: 64, 8>}, {pipeline_mode = #tpu.pipeline_mode<synchronous>, transform_indices = @transform_6, window_bounds = array<i64: 1, 8>}, {transform_indices = @transform_7, window_bounds = array<i64: 56, 8>}]} {
    %c0 = arith.constant 0 : index
    %c0_0 = arith.constant 0 : index
    %0 = vector.load %arg1[%c0, %c0_0] : memref<56x66xf32, #tpu.memory_space<vmem>>, vector<56x66xf32>
    %c0_1 = arith.constant 0 : index
    %c0_2 = arith.constant 0 : index
    %1 = vector.load %arg2[%c0_1, %c0_2] : memref<66x128xf32, #tpu.memory_space<vmem>>, vector<66x128xf32>
    %cst = arith.constant dense<0.000000e+00> : vector<56x128xf32>
    %2 = tpu.matmul %0, %1, %cst {dimension_numbers = #tpu.dot_dimension_numbers<[1], [0], [0], [1], [0, 0, 1, 1], [], []>} : vector<56x66xf32>, vector<66x128xf32>, vector<56x128xf32> -> vector<56x128xf32>
    %c0_3 = arith.constant 0 : index
    %c0_4 = arith.constant 0 : index
    %3 = vector.load %arg3[%c0_3, %c0_4] : memref<1x128xf32, #tpu.memory_space<vmem>>, vector<1x128xf32>
    %4 = vector.broadcast %3 : vector<1x128xf32> to vector<56x128xf32>
    %5 = arith.addf %2, %4 : vector<56x128xf32>
    %cst_5 = arith.constant 0.000000e+00 : f32
    %6 = vector.broadcast %cst_5 : f32 to vector<56x128xf32>
    %7 = arith.maximumf %5, %6 : vector<56x128xf32>
    %c0_6 = arith.constant 0 : index
    %c0_7 = arith.constant 0 : index
    %8 = vector.load %arg4[%c0_6, %c0_7] : memref<128x64xf32, #tpu.memory_space<vmem>>, vector<128x64xf32>
    %cst_8 = arith.constant dense<0.000000e+00> : vector<56x64xf32>
    %9 = tpu.matmul %7, %8, %cst_8 {dimension_numbers = #tpu.dot_dimension_numbers<[1], [0], [0], [1], [0, 0, 1, 1], [], []>} : vector<56x128xf32>, vector<128x64xf32>, vector<56x64xf32> -> vector<56x64xf32>
    %c0_9 = arith.constant 0 : index
    %c0_10 = arith.constant 0 : index
    %10 = vector.load %arg5[%c0_9, %c0_10] : memref<1x64xf32, #tpu.memory_space<vmem>>, vector<1x64xf32>
    %11 = vector.broadcast %10 : vector<1x64xf32> to vector<56x64xf32>
    %12 = arith.addf %9, %11 : vector<56x64xf32>
    %cst_11 = arith.constant 0.000000e+00 : f32
    %13 = vector.broadcast %cst_11 : f32 to vector<56x64xf32>
    %14 = arith.maximumf %12, %13 : vector<56x64xf32>
    %c0_12 = arith.constant 0 : index
    %c0_13 = arith.constant 0 : index
    %15 = vector.load %arg6[%c0_12, %c0_13] : memref<64x8xf32, #tpu.memory_space<vmem>>, vector<64x8xf32>
    %cst_14 = arith.constant dense<0.000000e+00> : vector<56x8xf32>
    %16 = tpu.matmul %14, %15, %cst_14 {dimension_numbers = #tpu.dot_dimension_numbers<[1], [0], [0], [1], [0, 0, 1, 1], [], []>} : vector<56x64xf32>, vector<64x8xf32>, vector<56x8xf32> -> vector<56x8xf32>
    %c0_15 = arith.constant 0 : index
    %c0_16 = arith.constant 0 : index
    %17 = vector.load %arg7[%c0_15, %c0_16] : memref<1x8xf32, #tpu.memory_space<vmem>>, vector<1x8xf32>
    %18 = vector.broadcast %17 : vector<1x8xf32> to vector<56x8xf32>
    %19 = arith.addf %16, %18 : vector<56x8xf32>
    %c0_17 = arith.constant 0 : index
    %c0_18 = arith.constant 0 : index
    %20 = vector.load %arg8[%c0_17, %c0_18] : memref<56x8xf32, #tpu.memory_space<vmem>>, vector<56x8xf32>
    tpu.vector_store %arg8[%c0_17, %c0_18], %19 {strides = array<i32>} : memref<56x8xf32, #tpu.memory_space<vmem>>, vector<56x8xf32>,
    return
  }
  func.func @transform_0(%arg0: i32) -> (i32, i32) {
    %c0_i32 = arith.constant 0 : i32
    %c0_i32_0 = arith.constant 0 : i32
    return %arg0, %c0_i32 : i32, i32
  }
  func.func @transform_1(%arg0: i32) -> (i32, i32) {
    %c0_i32 = arith.constant 0 : i32
    %c0_i32_0 = arith.constant 0 : i32
    %c0_i32_1 = arith.constant 0 : i32
    return %c0_i32, %c0_i32_0 : i32, i32
  }
  func.func @transform_2(%arg0: i32) -> (i32, i32) {
    %c0_i32 = arith.constant 0 : i32
    %c0_i32_0 = arith.constant 0 : i32
    %c0_i32_1 = arith.constant 0 : i32
    return %c0_i32, %c0_i32_0 : i32, i32
  }
  func.func @transform_3(%arg0: i32) -> (i32, i32) {
    %c0_i32 = arith.constant 0 : i32
    %c0_i32_0 = arith.constant 0 : i32
    %c0_i32_1 = arith.constant 0 : i32
    return %c0_i32, %c0_i32_0 : i32, i32
  }
  func.func @transform_4(%arg0: i32) -> (i32, i32) {
    %c0_i32 = arith.constant 0 : i32
    %c0_i32_0 = arith.constant 0 : i32
    %c0_i32_1 = arith.constant 0 : i32
    return %c0_i32, %c0_i32_0 : i32, i32
  }
  func.func @transform_5(%arg0: i32) -> (i32, i32) {
    %c0_i32 = arith.constant 0 : i32
    %c0_i32_0 = arith.constant 0 : i32
    %c0_i32_1 = arith.constant 0 : i32
    return %c0_i32, %c0_i32_0 : i32, i32
  }
  func.func @transform_6(%arg0: i32) -> (i32, i32) {
    %c0_i32 = arith.constant 0 : i32
    %c0_i32_0 = arith.constant 0 : i32
    %c0_i32_1 = arith.constant 0 : i32
    return %c0_i32, %c0_i32_0 : i32, i32
  }
  func.func @transform_7(%arg0: i32) -> (i32, i32) {
    %c0_i32 = arith.constant 0 : i32
    %c0_i32_0 = arith.constant 0 : i32
    return %arg0, %c0_i32 : i32, i32
  }
}

</mosaic_0001>

<llo_original>
// kernel: tpu_custom_call.1
$region0: #{tpu_custom_call.1}
  #allocation0 [shape = 'u32[]', space=smem, size = 0x4, offset = 0x4, fixed_abs, tag = 'smem constant byte address 0x4 - core index']
  #allocation1 [shape = 'u32[72,128]{1,0:T(1,128)}', space=vmem, size = 0x9000, scoped, tag = 'internal scratch']
  %s0 = inlined_call_operand.vmem [shape: f32[56,66], index: 0, kind: input, shape index: {}]
  %s1 = inlined_call_operand.vmem [shape: f32[66,128], index: 1, kind: input, shape index: {}]
  %s2 = inlined_call_operand.vmem [shape: f32[1,128], index: 2, kind: input, shape index: {}]
  %s3 = inlined_call_operand.vmem [shape: f32[128,64], index: 3, kind: input, shape index: {}]
  %s4 = inlined_call_operand.vmem [shape: f32[1,64], index: 4, kind: input, shape index: {}]
  %s5 = inlined_call_operand.vmem [shape: f32[64,8], index: 5, kind: input, shape index: {}]
  %s6 = inlined_call_operand.vmem [shape: f32[1,8], index: 6, kind: input, shape index: {}]
  %s7 = inlined_call_operand.vmem [shape: f32[56,8], index: 7, kind: output, shape index: {}]
  %s8 = sld [smem:[#allocation0]]
  $region38: #{tpu_custom_call.1} parent=0
    _
  %s10 = ssub.s32 1, %s8
  %s11 = scalar_select 0, %s10, %s8
  // Predicated region
  $region2: #{tpu_custom_call.1} parent=0 // pred_check
    _
  $region3: #{tpu_custom_call.1} parent=0 // pred_check_branch
    %13 = sbr.rel (0) target = $region5
  $region4: #{tpu_custom_call.1} parent=0 // pred_region
    _
  $region5: #{tpu_custom_call.1} parent=0 // pred_fallthru
    _
  // Predicated region
  $region6: #{tpu_custom_call.1} parent=0 // pred_check
    _
  $region7: #{tpu_custom_call.1} parent=0 // pred_check_branch
    %15 = sbr.rel (0) target = $region9
  $region8: #{tpu_custom_call.1} parent=0 // pred_region
    _
  $region9: #{tpu_custom_call.1} parent=0 // pred_fallthru
    _
  // Predicated region
  $region10: #{tpu_custom_call.1} parent=0 // pred_check
    _
  $region11: #{tpu_custom_call.1} parent=0 // pred_check_branch
    %17 = sbr.rel (0) target = $region13
  $region12: #{tpu_custom_call.1} parent=0 // pred_region
    _
  $region13: #{tpu_custom_call.1} parent=0 // pred_fallthru
    _
  // Predicated region
  $region14: #{tpu_custom_call.1} parent=0 // pred_check
    _
  $region15: #{tpu_custom_call.1} parent=0 // pred_check_branch
    %19 = sbr.rel (0) target = $region17
  $region16: #{tpu_custom_call.1} parent=0 // pred_region
    _
  $region17: #{tpu_custom_call.1} parent=0 // pred_fallthru
    _
  // Predicated region
  $region18: #{tpu_custom_call.1} parent=0 // pred_check
    _
  $region19: #{tpu_custom_call.1} parent=0 // pred_check_branch
    %21 = sbr.rel (0) target = $region21
  $region20: #{tpu_custom_call.1} parent=0 // pred_region
    _
  $region21: #{tpu_custom_call.1} parent=0 // pred_fallthru
    _
  // Predicated region
  $region22: #{tpu_custom_call.1} parent=0 // pred_check
    _
  $region23: #{tpu_custom_call.1} parent=0 // pred_check_branch
    %23 = sbr.rel (0) target = $region25
  $region24: #{tpu_custom_call.1} parent=0 // pred_region
    _
  $region25: #{tpu_custom_call.1} parent=0 // pred_fallthru
    _
  // Predicated region
  $region26: #{tpu_custom_call.1} parent=0 // pred_check
    _
  $region27: #{tpu_custom_call.1} parent=0 // pred_check_branch
    %25 = sbr.rel (0) target = $region29
  $region28: #{tpu_custom_call.1} parent=0 // pred_region
    _
  $region29: #{tpu_custom_call.1} parent=0 // pred_fallthru
    _
  %v26 = vld [vmem:[%s0] sm:$0xff]
  %v27 = vld [vmem:[%s0 + $0x8] sm:$0xff]
  %v28 = vld [vmem:[%s0 + $0x10] sm:$0xff]
  %v29 = vld [vmem:[%s0 + $0x18] sm:$0xff]
  %v30 = vld [vmem:[%s0 + $0x20] sm:$0xff]
  %v31 = vld [vmem:[%s0 + $0x28] sm:$0xff]
  %v32 = vld [vmem:[%s0 + $0x30] sm:$0xff]
  %v33 = vld [vmem:[%s1] sm:$0xff]
  %v34 = vld [vmem:[%s1 + $0x8] sm:$0xff]
  %v35 = vld [vmem:[%s1 + $0x10] sm:$0xff]
  %v36 = vld [vmem:[%s1 + $0x18] sm:$0xff]
  %v37 = vld [vmem:[%s1 + $0x20] sm:$0xff]
  %v38 = vld [vmem:[%s1 + $0x28] sm:$0xff]
  %v39 = vld [vmem:[%s1 + $0x30] sm:$0xff]
  %v40 = vld [vmem:[%s1 + $0x38] sm:$0xff]
  %v41 = vld [vmem:[%s1 + $0x40] sm:$0x3]
  %v42 = vld [vmem:[%s2] sm:$0x1]
  %v44 = vperm.slane %v42, 0
  %vm46 = vcmask 539648
  %v48 = vsel %vm46, %v26, 0
  %v51 = vsel %vm46, %v27, 0
  %v54 = vsel %vm46, %v28, 0
  %v57 = vsel %vm46, %v29, 0
  %v60 = vsel %vm46, %v30, 0
  %v63 = vsel %vm46, %v31, 0
  %v66 = vsel %vm46, %v32, 0
  %vm68 = vcmask 1041408
  %v70 = vsel %vm68, %v41, 0
  %72 = vmatpush.msra.mxu0 0.0
  %73 = vmatpush.msra.mxu0 0.0
  %74 = vmatpush.msra.mxu0 0.0
  %75 = vmatpush.msra.mxu0 0.0
  %76 = vmatpush.msra.mxu0 0.0
  %77 = vmatpush.msra.mxu0 0.0
  %78 = vmatpush.msra.mxu0 0.0
  %79 = vmatpush.msra.mxu0 %v70
  %80 = vmatpush.msra.mxu0 %v40
  %81 = vmatpush.msra.mxu0 %v39
  %82 = vmatpush.msra.mxu0 %v38
  %83 = vmatpush.msra.mxu0 %v37
  %84 = vmatpush.msra.mxu0 %v36
  %85 = vmatpush.msra.mxu0 %v35
  %86 = vmatpush.msra.mxu0 %v34
  %87 = vmatpush.msra.mxu0 %v33
  %88 = vmatmul.f32.gmra.mxu0 %v48
  %v89 = vpop.f32.mrf.mxu0
  %v90 = vadd.f32 %v44, %v89
  %91 = vmatmul.f32.gmra.mxu0 %v51
  %v92 = vpop.f32.mrf.mxu0
  %v93 = vadd.f32 %v44, %v92
  %94 = vmatmul.f32.gmra.mxu0 %v54
  %v95 = vpop.f32.mrf.mxu0
  %v96 = vadd.f32 %v44, %v95
  %97 = vmatmul.f32.gmra.mxu0 %v57
  %v98 = vpop.f32.mrf.mxu0
  %v99 = vadd.f32 %v44, %v98
  %100 = vmatmul.f32.gmra.mxu0 %v60
  %v101 = vpop.f32.mrf.mxu0
  %v102 = vadd.f32 %v44, %v101
  %103 = vmatmul.f32.gmra.mxu0 %v63
  %v104 = vpop.f32.mrf.mxu0
  %v105 = vadd.f32 %v44, %v104
  %106 = vmatmul.f32.gmra.mxu0 %v66
  %v107 = vpop.f32.mrf.mxu0
  %v108 = vadd.f32 %v44, %v107
  %109 = vdwg.mxu0
  %v110 = vmax.f32 %v90, 0.0
  %v111 = vmax.f32 %v93, 0.0
  %v112 = vmax.f32 %v96, 0.0
  %v113 = vmax.f32 %v99, 0.0
  %v114 = vmax.f32 %v102, 0.0
  %v115 = vmax.f32 %v105, 0.0
  %v116 = vmax.f32 %v108, 0.0
  %v117 = vld [vmem:[%s3] sm:$0xff]
  %v118 = vld [vmem:[%s3 + $0x8] sm:$0xff]
  %v119 = vld [vmem:[%s3 + $0x10] sm:$0xff]
  %v120 = vld [vmem:[%s3 + $0x18] sm:$0xff]
  %v121 = vld [vmem:[%s3 + $0x20] sm:$0xff]
  %v122 = vld [vmem:[%s3 + $0x28] sm:$0xff]
  %v123 = vld [vmem:[%s3 + $0x30] sm:$0xff]
  %v124 = vld [vmem:[%s3 + $0x38] sm:$0xff]
  %v125 = vld [vmem:[%s3 + $0x40] sm:$0xff]
  %v126 = vld [vmem:[%s3 + $0x48] sm:$0xff]
  %v127 = vld [vmem:[%s3 + $0x50] sm:$0xff]
  %v128 = vld [vmem:[%s3 + $0x58] sm:$0xff]
  %v129 = vld [vmem:[%s3 + $0x60] sm:$0xff]
  %v130 = vld [vmem:[%s3 + $0x68] sm:$0xff]
  %v131 = vld [vmem:[%s3 + $0x70] sm:$0xff]
  %v132 = vld [vmem:[%s3 + $0x78] sm:$0xff]
  %v133 = vld [vmem:[%s4] sm:$0x1]
  %v135 = vperm.slane %v133, 0
  %137 = vmatpush.msra.mxu0 %v132
  %138 = vmatpush.msra.mxu0 %v131
  %139 = vmatpush.msra.mxu0 %v130
  %140 = vmatpush.msra.mxu0 %v129
  %141 = vmatpush.msra.mxu0 %v128
  %142 = vmatpush.msra.mxu0 %v127
  %143 = vmatpush.msra.mxu0 %v126
  %144 = vmatpush.msra.mxu0 %v125
  %145 = vmatpush.msra.mxu0 %v124
  %146 = vmatpush.msra.mxu0 %v123
  %147 = vmatpush.msra.mxu0 %v122
  %148 = vmatpush.msra.mxu0 %v121
  %149 = vmatpush.msra.mxu0 %v120
  %150 = vmatpush.msra.mxu0 %v119
  %151 = vmatpush.msra.mxu0 %v118
  %152 = vmatpush.msra.mxu0 %v117
  %153 = vmatmul.f32.gmra.mxu0 %v110
  %v154 = vpop.f32.mrf.mxu0
  %v155 = vadd.f32 %v135, %v154
  %156 = vmatmul.f32.gmra.mxu0 %v111
  %v157 = vpop.f32.mrf.mxu0
  %v158 = vadd.f32 %v135, %v157
  %159 = vmatmul.f32.gmra.mxu0 %v112
  %v160 = vpop.f32.mrf.mxu0
  %v161 = vadd.f32 %v135, %v160
  %162 = vmatmul.f32.gmra.mxu0 %v113
  %v163 = vpop.f32.mrf.mxu0
  %v164 = vadd.f32 %v135, %v163
  %165 = vmatmul.f32.gmra.mxu0 %v114
  %v166 = vpop.f32.mrf.mxu0
  %v167 = vadd.f32 %v135, %v166
  %168 = vmatmul.f32.gmra.mxu0 %v115
  %v169 = vpop.f32.mrf.mxu0
  %v170 = vadd.f32 %v135, %v169
  %171 = vmatmul.f32.gmra.mxu0 %v116
  %v172 = vpop.f32.mrf.mxu0
  %v173 = vadd.f32 %v135, %v172
  %174 = vdwg.mxu0
  %v175 = vmax.f32 %v155, 0.0
  %v176 = vmax.f32 %v158, 0.0
  %v177 = vmax.f32 %v161, 0.0
  %v178 = vmax.f32 %v164, 0.0
  %v179 = vmax.f32 %v167, 0.0
  %v180 = vmax.f32 %v170, 0.0
  %v181 = vmax.f32 %v173, 0.0
  %v182 = vld [vmem:[%s5] sm:$0xff]
  %v183 = vld [vmem:[%s5 + $0x8] sm:$0xff]
  %v184 = vld [vmem:[%s5 + $0x10] sm:$0xff]
  %v185 = vld [vmem:[%s5 + $0x18] sm:$0xff]
  %v186 = vld [vmem:[%s5 + $0x20] sm:$0xff]
  %v187 = vld [vmem:[%s5 + $0x28] sm:$0xff]
  %v188 = vld [vmem:[%s5 + $0x30] sm:$0xff]
  %v189 = vld [vmem:[%s5 + $0x38] sm:$0xff]
  %v190 = vld [vmem:[%s6] sm:$0x1]
  %v192 = vperm.slane %v190, 0
  %vm194 = vcmask 523264
  %v196 = vsel %vm194, %v175, 0
  %v199 = vsel %vm194, %v176, 0
  %v202 = vsel %vm194, %v177, 0
  %v205 = vsel %vm194, %v178, 0
  %v208 = vsel %vm194, %v179, 0
  %v211 = vsel %vm194, %v180, 0
  %v214 = vsel %vm194, %v181, 0
  %216 = vmatpush.msra.mxu0 0.0
  %217 = vmatpush.msra.mxu0 0.0
  %218 = vmatpush.msra.mxu0 0.0
  %219 = vmatpush.msra.mxu0 0.0
  %220 = vmatpush.msra.mxu0 0.0
  %221 = vmatpush.msra.mxu0 0.0
  %222 = vmatpush.msra.mxu0 0.0
  %223 = vmatpush.msra.mxu0 0.0
  %224 = vmatpush.msra.mxu0 %v189
  %225 = vmatpush.msra.mxu0 %v188
  %226 = vmatpush.msra.mxu0 %v187
  %227 = vmatpush.msra.mxu0 %v186
  %228 = vmatpush.msra.mxu0 %v185
  %229 = vmatpush.msra.mxu0 %v184
  %230 = vmatpush.msra.mxu0 %v183
  %231 = vmatpush.msra.mxu0 %v182
  %232 = vmatmul.f32.gmra.mxu0 %v196
  %v233 = vpop.f32.mrf.mxu0
  %v234 = vadd.f32 %v192, %v233
  %235 = vmatmul.f32.gmra.mxu0 %v199
  %v236 = vpop.f32.mrf.mxu0
  %v237 = vadd.f32 %v192, %v236
  %238 = vmatmul.f32.gmra.mxu0 %v202
  %v239 = vpop.f32.mrf.mxu0
  %v240 = vadd.f32 %v192, %v239
  %241 = vmatmul.f32.gmra.mxu0 %v205
  %v242 = vpop.f32.mrf.mxu0
  %v243 = vadd.f32 %v192, %v242
  %244 = vmatmul.f32.gmra.mxu0 %v208
  %v245 = vpop.f32.mrf.mxu0
  %v246 = vadd.f32 %v192, %v245
  %247 = vmatmul.f32.gmra.mxu0 %v211
  %v248 = vpop.f32.mrf.mxu0
  %v249 = vadd.f32 %v192, %v248
  %250 = vmatmul.f32.gmra.mxu0 %v214
  %v251 = vpop.f32.mrf.mxu0
  %v252 = vadd.f32 %v192, %v251
  %253 = vdwg.mxu0
  %vm254 = vcmask 64512
  %255 = vst.msk [vmem:[%s7] sm:$0xff] %vm254, %v234
  %256 = vst.msk [vmem:[%s7 + $0x8] sm:$0xff] %vm254, %v237
  %257 = vst.msk [vmem:[%s7 + $0x10] sm:$0xff] %vm254, %v240
  %258 = vst.msk [vmem:[%s7 + $0x18] sm:$0xff] %vm254, %v243
  %259 = vst.msk [vmem:[%s7 + $0x20] sm:$0xff] %vm254, %v246
  %260 = vst.msk [vmem:[%s7 + $0x28] sm:$0xff] %vm254, %v249
  %261 = vst.msk [vmem:[%s7 + $0x30] sm:$0xff] %vm254, %v252
  // Predicated region
  $region30: #{tpu_custom_call.1} parent=0 // pred_check
    _
  $region31: #{tpu_custom_call.1} parent=0 // pred_check_branch
    %263 = sbr.rel (0) target = $region33
  $region32: #{tpu_custom_call.1} parent=0 // pred_region
    _
  $region33: #{tpu_custom_call.1} parent=0 // pred_fallthru
    _
  // Predicated region
  $region34: #{tpu_custom_call.1} parent=0 // pred_check
    _
  $region35: #{tpu_custom_call.1} parent=0 // pred_check_branch
    %265 = sbr.rel (0) target = $region37
  $region36: #{tpu_custom_call.1} parent=0 // pred_region
    _
  $region37: #{tpu_custom_call.1} parent=0 // pred_fallthru
    _

</llo_original>
